<compile_context>
chip_gen: v5e
topology: v5e:2x2
jax: 0.10.0
libtpu: 0.0.40
codegen_flags: <defaults>
</compile_context>

<pallas_src>
import jax
import jax.numpy as jnp
from jax import lax
from jax.experimental import pallas as pl
from jax.experimental.pallas import tpu as pltpu

_LANES = 512          # lane-dense slab width (4 * 128 lanes)
_MAX_TILE_ROWS = 512  # 512 x 512 x 4B = 1 MiB per f32 image tile buffer
_NUM_CORES = 2        # leading "parallel" grid axis (v7x megacore split)


def _cdiv(a, b):
    return (a + b - 1) // b


def _round_up(a, b):
    return _cdiv(a, b) * b


def _pad_to_slab(x, rows, lanes):
    """Flatten to a zero-padded (rows, lanes) slab in the array's native dtype."""
    flat = jnp.ravel(x)
    pad = rows * lanes - flat.shape[0]
    if pad:
        flat = jnp.pad(flat, (0, pad))
    return flat.reshape(rows, lanes)


def _make_loss_kernel(n_d, d_rows, lanes):
    """Kernel producing per-core partial sums (sublanes 0..3 of the output tile):
       0: sum |fake - real|          (L1 * n_img)
       1: sum softplus( d_fake)      (BCE(d_fake, 0) * n_d)
       2: sum softplus(-d_fake)      (BCE(d_fake, 1) * n_d)
       3: sum softplus(-d_real)      (BCE(d_real, 1) * n_d)
    """
    n_d_padded = d_rows * lanes

    def kernel(fake_ref, real_ref, dfake_ref, dreal_ref, out_ref, acc_ref):
        c = pl.program_id(0)            # core split (parallel)
        i = pl.program_id(1)            # image tile (reduction / arbitrary)
        last = pl.num_programs(1) - 1

        @pl.when(i == 0)
        def _init():
            acc_ref[0] = jnp.float32(0.0)
            acc_ref[1] = jnp.float32(0.0)
            acc_ref[2] = jnp.float32(0.0)
            acc_ref[3] = jnp.float32(0.0)

        # Discriminator logits are much smaller than the images: reduce them
        # exactly once (core 0, first tile) so their EUP-heavy softplus work
        # hides under the image DMA stream instead of repeating per tile.
        @pl.when(jnp.logical_and(c == 0, i == 0))
        def _d_terms():
            df = dfake_ref[...].astype(jnp.float32)
            dr = dreal_ref[...].astype(jnp.float32)
            # softplus(+-x) = relu(+-x) + log1p(exp(-|x|)):
            # share the transcendental chain between the two d_fake terms.
            t = jnp.log1p(jnp.exp(-jnp.abs(df)))
            relu_p = jnp.maximum(df, 0.0)
            relu_n = jnp.maximum(-df, 0.0)
            sp_real = jnp.maximum(-dr, 0.0) + jnp.log1p(jnp.exp(-jnp.abs(dr)))
            if n_d != n_d_padded:   # mask zero padding (softplus(0) = log 2)
                row = lax.broadcasted_iota(jnp.int32, (d_rows, lanes), 0)
                col = lax.broadcasted_iota(jnp.int32, (d_rows, lanes), 1)
                valid = (row * lanes + col) < n_d
                zero = jnp.zeros_like(t)
                t = jnp.where(valid, t, zero)
                relu_p = jnp.where(valid, relu_p, zero)
                relu_n = jnp.where(valid, relu_n, zero)
                sp_real = jnp.where(valid, sp_real, zero)
            sum_t = jnp.sum(t)
            acc_ref[1] = jnp.sum(relu_p) + sum_t
            acc_ref[2] = jnp.sum(relu_n) + sum_t
            acc_ref[3] = jnp.sum(sp_real)

        # Streaming L1 partial sum for this image tile.  Zero padding is safe
        # here (|0 - 0| = 0), so no mask is needed.
        f = fake_ref[...].astype(jnp.float32)
        r = real_ref[...].astype(jnp.float32)
        acc_ref[0] += jnp.sum(jnp.abs(f - r))

        @pl.when(i == last)
        def _finalize():
            # Place the 4 per-core sums into sublanes 0..3 of a full (8, 128)
            # tile (lane-dense, unmasked store); the wrapper reads lane 0.
            row = lax.broadcasted_iota(jnp.int32, (8, 128), 0)
            tile = jnp.where(row == 0, acc_ref[0], 0.0)
            tile = jnp.where(row == 1, acc_ref[1], tile)
            tile = jnp.where(row == 2, acc_ref[2], tile)
            tile = jnp.where(row == 3, acc_ref[3], tile)
            out_ref[0] = tile

    return kernel


def pix2pix_loss(batch, _lambda=100.0):
    fake = batch['fake_image']
    real = batch['real_image']
    d_fake = batch['d_fake']
    d_real = batch['d_real']

    n_img = fake.size
    n_d = d_fake.size
    assert real.size == n_img and d_real.size == n_d

    # Image slabs: tiled + streamed through the grid (double-buffered).
    img_rows_raw = max(_cdiv(n_img, _LANES), 1)
    tile_rows = min(_MAX_TILE_ROWS,
                    _round_up(_cdiv(img_rows_raw, _NUM_CORES), 8))
    img_rows = _round_up(img_rows_raw, _NUM_CORES * tile_rows)
    n_tiles = img_rows // (_NUM_CORES * tile_rows)

    fake2 = _pad_to_slab(fake, img_rows, _LANES)
    real2 = _pad_to_slab(real, img_rows, _LANES)

    # Discriminator slabs: small, VMEM-resident, reduced once.
    d_rows = max(_cdiv(n_d, _LANES), 1)
    dfake2 = _pad_to_slab(d_fake, d_rows, _LANES)
    dreal2 = _pad_to_slab(d_real, d_rows, _LANES)

    kernel = _make_loss_kernel(n_d, d_rows, _LANES)

    img_map = lambda c, i: (c * n_tiles + i, 0)
    d_map = lambda c, i: (0, 0)

    partials = pl.pallas_call(
        kernel,
        out_shape=jax.ShapeDtypeStruct((_NUM_CORES, 8, 128), jnp.float32),
        grid_spec=pltpu.PrefetchScalarGridSpec(
            num_scalar_prefetch=0,
            grid=(_NUM_CORES, n_tiles),
            in_specs=[
                pl.BlockSpec((tile_rows, _LANES), img_map),
                pl.BlockSpec((tile_rows, _LANES), img_map),
                pl.BlockSpec((d_rows, _LANES), d_map),
                pl.BlockSpec((d_rows, _LANES), d_map),
            ],
            out_specs=pl.BlockSpec((1, 8, 128), lambda c, i: (c, 0, 0)),
            scratch_shapes=[pltpu.SMEM((4,), jnp.float32)],
        ),
        compiler_params=pltpu.CompilerParams(
            dimension_semantics=("parallel", "arbitrary")),
    )(fake2, real2, dfake2, dreal2)

    # Combine the per-core partials (2-way add) and do the cheap scalar math.
    sums = jnp.sum(partials[:, :4, 0], axis=0)   # (4,) f32 raw totals

    g_l1_loss = sums[0] / jnp.float32(n_img)
    d_fake_loss = sums[1] / jnp.float32(n_d)
    g_fake_loss = sums[2] / jnp.float32(n_d)
    d_real_loss = sums[3] / jnp.float32(n_d)

    out = dict(batch)
    out['g_l1_loss'] = g_l1_loss
    out['d_fake_loss'] = d_fake_loss
    out['d_real_loss'] = d_real_loss
    out['g_fake_loss'] = g_fake_loss
    out['d_loss'] = (d_real_loss + d_fake_loss) / 2.0
    out['g_loss'] = g_l1_loss * jnp.float32(_lambda) + g_fake_loss
    return out


if __name__ == "__main__":
    key = jax.random.PRNGKey(0)
    k1, k2, k3, k4 = jax.random.split(key, 4)

    # Small shapes consistent with the module: images NCHW [2,4,16,16],
    # patch-discriminator logits NCHW [2,1,16,16].
    fake_image = jax.random.normal(k1, (2, 4, 16, 16), dtype=jnp.float32)
    real_image = jax.random.normal(k2, (2, 4, 16, 16), dtype=jnp.float32)
    d_fake = jax.random.normal(k3, (2, 1, 16, 16), dtype=jnp.float32)
    d_real = jax.random.normal(k4, (2, 1, 16, 16), dtype=jnp.float32)

    batch = {
        'fake_image': fake_image,
        'real_image': real_image,
        'd_fake': d_fake,
        'd_real': d_real,
    }

    out = pix2pix_loss(batch, _lambda=100.0)
    jax.block_until_ready(out['g_loss'])
    jax.block_until_ready(out['d_loss'])

    # Pure-JAX reference check (L1 mean + BCEWithLogits means).
    def _sp(x):
        return jnp.maximum(x, 0.0) + jnp.log1p(jnp.exp(-jnp.abs(x)))

    ref_l1 = jnp.mean(jnp.abs(fake_image - real_image))
    ref_d_fake = jnp.mean(_sp(d_fake))
    ref_g_fake = jnp.mean(_sp(-d_fake))
    ref_d_real = jnp.mean(_sp(-d_real))
    ref_d_loss = (ref_d_real + ref_d_fake) / 2.0
    ref_g_loss = ref_l1 * 100.0 + ref_g_fake

    assert jnp.allclose(out['g_l1_loss'], ref_l1, rtol=1e-5, atol=1e-5)
    assert jnp.allclose(out['d_fake_loss'], ref_d_fake, rtol=1e-5, atol=1e-5)
    assert jnp.allclose(out['d_real_loss'], ref_d_real, rtol=1e-5, atol=1e-5)
    assert jnp.allclose(out['g_fake_loss'], ref_g_fake, rtol=1e-5, atol=1e-5)
    assert jnp.allclose(out['d_loss'], ref_d_loss, rtol=1e-5, atol=1e-5)
    assert jnp.allclose(out['g_loss'], ref_g_loss, rtol=1e-4, atol=1e-4)

    print("KERNEL_OK")
</pallas_src>

<mosaic_0001>
module attributes {stable_mosaic.version = 11 : i64} {
  func.func @kernel(%arg0: i32, %arg1: i32, %arg2: memref<8x512xf32, #tpu.memory_space<vmem>>, %arg3: memref<8x512xf32, #tpu.memory_space<vmem>>, %arg4: memref<1x512xf32, #tpu.memory_space<vmem>>, %arg5: memref<1x512xf32, #tpu.memory_space<vmem>>, %arg6: memref<1x8x128xf32, #tpu.memory_space<vmem>>, %arg7: memref<4xf32, #tpu.memory_space<smem>>) attributes {dimension_semantics = [#tpu.dimension_semantics<parallel>, #tpu.dimension_semantics<arbitrary>], iteration_bounds = array<i64: 2, 1>, scalar_prefetch = 0 : i64, scratch_operands = 1 : i64, tpu.core_type = #tpu.core_type<tc>, window_params = [{transform_indices = @transform_0, window_bounds = array<i64: 8, 512>}, {transform_indices = @transform_1, window_bounds = array<i64: 8, 512>}, {pipeline_mode = #tpu.pipeline_mode<synchronous>, transform_indices = @transform_2, window_bounds = array<i64: 1, 512>}, {pipeline_mode = #tpu.pipeline_mode<synchronous>, transform_indices = @transform_3, window_bounds = array<i64: 1, 512>}, {transform_indices = @transform_4, window_bounds = array<i64: 1, 8, 128>}]} {
    %c0_i32 = arith.constant 0 : i32
    %0 = arith.cmpi eq, %arg1, %c0_i32 : i32
    %1 = arith.extui %0 : i1 to i32
    %c0_i32_0 = arith.constant 0 : i32
    %2 = arith.cmpi ne, %1, %c0_i32_0 : i32
    scf.if %2 {
      %cst_11 = arith.constant 0.000000e+00 : f32
      %c0_12 = arith.constant 0 : index
      %22 = memref.load %arg7[%c0_12] : memref<4xf32, #tpu.memory_space<smem>>
      memref.store %cst_11, %arg7[%c0_12] : memref<4xf32, #tpu.memory_space<smem>>
      %cst_13 = arith.constant 0.000000e+00 : f32
      %c1 = arith.constant 1 : index
      %23 = memref.load %arg7[%c1] : memref<4xf32, #tpu.memory_space<smem>>
      memref.store %cst_13, %arg7[%c1] : memref<4xf32, #tpu.memory_space<smem>>
      %cst_14 = arith.constant 0.000000e+00 : f32
      %c2 = arith.constant 2 : index
      %24 = memref.load %arg7[%c2] : memref<4xf32, #tpu.memory_space<smem>>
      memref.store %cst_14, %arg7[%c2] : memref<4xf32, #tpu.memory_space<smem>>
      %cst_15 = arith.constant 0.000000e+00 : f32
      %c3 = arith.constant 3 : index
      %25 = memref.load %arg7[%c3] : memref<4xf32, #tpu.memory_space<smem>>
      memref.store %cst_15, %arg7[%c3] : memref<4xf32, #tpu.memory_space<smem>>
    } else {
    }
    %c0_i32_1 = arith.constant 0 : i32
    %3 = arith.cmpi eq, %arg0, %c0_i32_1 : i32
    %c0_i32_2 = arith.constant 0 : i32
    %4 = arith.cmpi eq, %arg1, %c0_i32_2 : i32
    %5 = arith.andi %3, %4 : i1
    %6 = arith.extui %5 : i1 to i32
    %c0_i32_3 = arith.constant 0 : i32
    %7 = arith.cmpi ne, %6, %c0_i32_3 : i32
    scf.if %7 {
      %c0_11 = arith.constant 0 : index
      %c0_12 = arith.constant 0 : index
      %22 = vector.load %arg4[%c0_11, %c0_12] : memref<1x512xf32, #tpu.memory_space<vmem>>, vector<1x512xf32>
      %c0_13 = arith.constant 0 : index
      %c0_14 = arith.constant 0 : index
      %23 = vector.load %arg5[%c0_13, %c0_14] : memref<1x512xf32, #tpu.memory_space<vmem>>, vector<1x512xf32>
      %24 = math.absf %22 : vector<1x512xf32>
      %cst_15 = arith.constant 0.000000e+00 : f32
      %25 = vector.broadcast %cst_15 : f32 to vector<1x512xf32>
      %26 = arith.subf %25, %24 : vector<1x512xf32>
      %27 = math.exp %26 : vector<1x512xf32>
      %28 = math.log1p %27 : vector<1x512xf32>
      %cst_16 = arith.constant 0.000000e+00 : f32
      %29 = vector.broadcast %cst_16 : f32 to vector<1x512xf32>
      %30 = arith.maximumf %22, %29 : vector<1x512xf32>
      %cst_17 = arith.constant 0.000000e+00 : f32
      %31 = vector.broadcast %cst_17 : f32 to vector<1x512xf32>
      %32 = arith.subf %31, %22 : vector<1x512xf32>
      %cst_18 = arith.constant 0.000000e+00 : f32
      %33 = vector.broadcast %cst_18 : f32 to vector<1x512xf32>
      %34 = arith.maximumf %32, %33 : vector<1x512xf32>
      %cst_19 = arith.constant 0.000000e+00 : f32
      %35 = vector.broadcast %cst_19 : f32 to vector<1x512xf32>
      %36 = arith.subf %35, %23 : vector<1x512xf32>
      %cst_20 = arith.constant 0.000000e+00 : f32
      %37 = vector.broadcast %cst_20 : f32 to vector<1x512xf32>
      %38 = arith.maximumf %36, %37 : vector<1x512xf32>
      %39 = math.absf %23 : vector<1x512xf32>
      %cst_21 = arith.constant 0.000000e+00 : f32
      %40 = vector.broadcast %cst_21 : f32 to vector<1x512xf32>
      %41 = arith.subf %40, %39 : vector<1x512xf32>
      %42 = math.exp %41 : vector<1x512xf32>
      %43 = math.log1p %42 : vector<1x512xf32>
      %44 = arith.addf %38, %43 : vector<1x512xf32>
      %45 = vector.shape_cast %28 : vector<1x512xf32> to vector<1x1x512xf32>
      %cst_22 = arith.constant dense<0.000000e+00> : vector<1xf32>
      %46 = vector.multi_reduction <add>, %45, %cst_22 [1, 2] : vector<1x1x512xf32> to vector<1xf32>
      %47 = vector.shape_cast %46 : vector<1xf32> to vector<1x1x1xf32>
      %48 = vector.extract %47[0, 0, 0] : f32 from vector<1x1x1xf32>
      %49 = vector.shape_cast %30 : vector<1x512xf32> to vector<1x1x512xf32>
      %cst_23 = arith.constant dense<0.000000e+00> : vector<1xf32>
      %50 = vector.multi_reduction <add>, %49, %cst_23 [1, 2] : vector<1x1x512xf32> to vector<1xf32>
      %51 = vector.shape_cast %50 : vector<1xf32> to vector<1x1x1xf32>
      %52 = vector.extract %51[0, 0, 0] : f32 from vector<1x1x1xf32>
      %53 = arith.addf %52, %48 : f32
      %c1 = arith.constant 1 : index
      %54 = memref.load %arg7[%c1] : memref<4xf32, #tpu.memory_space<smem>>
      memref.store %53, %arg7[%c1] : memref<4xf32, #tpu.memory_space<smem>>
      %55 = vector.shape_cast %34 : vector<1x512xf32> to vector<1x1x512xf32>
      %cst_24 = arith.constant dense<0.000000e+00> : vector<1xf32>
      %56 = vector.multi_reduction <add>, %55, %cst_24 [1, 2] : vector<1x1x512xf32> to vector<1xf32>
      %57 = vector.shape_cast %56 : vector<1xf32> to vector<1x1x1xf32>
      %58 = vector.extract %57[0, 0, 0] : f32 from vector<1x1x1xf32>
      %59 = arith.addf %58, %48 : f32
      %c2 = arith.constant 2 : index
      %60 = memref.load %arg7[%c2] : memref<4xf32, #tpu.memory_space<smem>>
      memref.store %59, %arg7[%c2] : memref<4xf32, #tpu.memory_space<smem>>
      %61 = vector.shape_cast %44 : vector<1x512xf32> to vector<1x1x512xf32>
      %cst_25 = arith.constant dense<0.000000e+00> : vector<1xf32>
      %62 = vector.multi_reduction <add>, %61, %cst_25 [1, 2] : vector<1x1x512xf32> to vector<1xf32>
      %63 = vector.shape_cast %62 : vector<1xf32> to vector<1x1x1xf32>
      %64 = vector.extract %63[0, 0, 0] : f32 from vector<1x1x1xf32>
      %c3 = arith.constant 3 : index
      %65 = memref.load %arg7[%c3] : memref<4xf32, #tpu.memory_space<smem>>
      memref.store %64, %arg7[%c3] : memref<4xf32, #tpu.memory_space<smem>>
    } else {
    }
    %c0 = arith.constant 0 : index
    %c0_4 = arith.constant 0 : index
    %8 = vector.load %arg2[%c0, %c0_4] : memref<8x512xf32, #tpu.memory_space<vmem>>, vector<8x512xf32>
    %c0_5 = arith.constant 0 : index
    %c0_6 = arith.constant 0 : index
    %9 = vector.load %arg3[%c0_5, %c0_6] : memref<8x512xf32, #tpu.memory_space<vmem>>, vector<8x512xf32>
    %c0_7 = arith.constant 0 : index
    %10 = memref.load %arg7[%c0_7] : memref<4xf32, #tpu.memory_space<smem>>
    %11 = arith.subf %8, %9 : vector<8x512xf32>
    %12 = math.absf %11 : vector<8x512xf32>
    %13 = vector.shape_cast %12 : vector<8x512xf32> to vector<1x8x512xf32>
    %cst = arith.constant dense<0.000000e+00> : vector<1xf32>
    %14 = vector.multi_reduction <add>, %13, %cst [1, 2] : vector<1x8x512xf32> to vector<1xf32>
    %15 = vector.shape_cast %14 : vector<1xf32> to vector<1x1x1xf32>
    %16 = vector.extract %15[0, 0, 0] : f32 from vector<1x1x1xf32>
    %17 = arith.addf %10, %16 : f32
    %c0_8 = arith.constant 0 : index
    %18 = memref.load %arg7[%c0_8] : memref<4xf32, #tpu.memory_space<smem>>
    memref.store %17, %arg7[%c0_8] : memref<4xf32, #tpu.memory_space<smem>>
    %c0_i32_9 = arith.constant 0 : i32
    %19 = arith.cmpi eq, %arg1, %c0_i32_9 : i32
    %20 = arith.extui %19 : i1 to i32
    %c0_i32_10 = arith.constant 0 : i32
    %21 = arith.cmpi ne, %20, %c0_i32_10 : i32
    scf.if %21 {
      %22 = tpu.iota {dimensions = array<i32: 0>} : vector<8x128xi32>
      %c0_i32_11 = arith.constant 0 : i32
      %23 = vector.broadcast %c0_i32_11 : i32 to vector<8x128xi32>
      %24 = arith.cmpi eq, %22, %23 : vector<8x128xi32>
      %c0_12 = arith.constant 0 : index
      %25 = memref.load %arg7[%c0_12] : memref<4xf32, #tpu.memory_space<smem>>
      %cst_13 = arith.constant 0.000000e+00 : f32
      %26 = vector.broadcast %25 : f32 to vector<8x128xf32>
      %27 = vector.broadcast %cst_13 : f32 to vector<8x128xf32>
      %28 = arith.select %24, %26, %27 : vector<8x128xi1>, vector<8x128xf32>
      %c1_i32 = arith.constant 1 : i32
      %29 = vector.broadcast %c1_i32 : i32 to vector<8x128xi32>
      %30 = arith.cmpi eq, %22, %29 : vector<8x128xi32>
      %c1 = arith.constant 1 : index
      %31 = memref.load %arg7[%c1] : memref<4xf32, #tpu.memory_space<smem>>
      %32 = vector.broadcast %31 : f32 to vector<8x128xf32>
      %33 = arith.select %30, %32, %28 : vector<8x128xi1>, vector<8x128xf32>
      %c2_i32 = arith.constant 2 : i32
      %34 = vector.broadcast %c2_i32 : i32 to vector<8x128xi32>
      %35 = arith.cmpi eq, %22, %34 : vector<8x128xi32>
      %c2 = arith.constant 2 : index
      %36 = memref.load %arg7[%c2] : memref<4xf32, #tpu.memory_space<smem>>
      %37 = vector.broadcast %36 : f32 to vector<8x128xf32>
      %38 = arith.select %35, %37, %33 : vector<8x128xi1>, vector<8x128xf32>
      %c3_i32 = arith.constant 3 : i32
      %39 = vector.broadcast %c3_i32 : i32 to vector<8x128xi32>
      %40 = arith.cmpi eq, %22, %39 : vector<8x128xi32>
      %c3 = arith.constant 3 : index
      %41 = memref.load %arg7[%c3] : memref<4xf32, #tpu.memory_space<smem>>
      %42 = vector.broadcast %41 : f32 to vector<8x128xf32>
      %43 = arith.select %40, %42, %38 : vector<8x128xi1>, vector<8x128xf32>
      %c0_14 = arith.constant 0 : index
      %c0_15 = arith.constant 0 : index
      %c0_16 = arith.constant 0 : index
      %44 = vector.load %arg6[%c0_14, %c0_15, %c0_16] : memref<1x8x128xf32, #tpu.memory_space<vmem>>, vector<1x8x128xf32>
      %45 = vector.shape_cast %44 : vector<1x8x128xf32> to vector<8x128xf32>
      %46 = vector.shape_cast %43 : vector<8x128xf32> to vector<1x8x128xf32>
      tpu.vector_store %arg6[%c0_14, %c0_15, %c0_16], %46 {strides = array<i32>} : memref<1x8x128xf32, #tpu.memory_space<vmem>>, vector<1x8x128xf32>,
    } else {
    }
    return
  }
  func.func @transform_0(%arg0: i32, %arg1: i32) -> (i32, i32) {
    %c1_i32 = arith.constant 1 : i32
    %0 = arith.muli %arg0, %c1_i32 : i32
    %1 = arith.addi %0, %arg1 : i32
    %c0_i32 = arith.constant 0 : i32
    %c0_i32_0 = arith.constant 0 : i32
    return %1, %c0_i32 : i32, i32
  }
  func.func @transform_1(%arg0: i32, %arg1: i32) -> (i32, i32) {
    %c1_i32 = arith.constant 1 : i32
    %0 = arith.muli %arg0, %c1_i32 : i32
    %1 = arith.addi %0, %arg1 : i32
    %c0_i32 = arith.constant 0 : i32
    %c0_i32_0 = arith.constant 0 : i32
    return %1, %c0_i32 : i32, i32
  }
  func.func @transform_2(%arg0: i32, %arg1: i32) -> (i32, i32) {
    %c0_i32 = arith.constant 0 : i32
    %c0_i32_0 = arith.constant 0 : i32
    %c0_i32_1 = arith.constant 0 : i32
    return %c0_i32, %c0_i32_0 : i32, i32
  }
  func.func @transform_3(%arg0: i32, %arg1: i32) -> (i32, i32) {
    %c0_i32 = arith.constant 0 : i32
    %c0_i32_0 = arith.constant 0 : i32
    %c0_i32_1 = arith.constant 0 : i32
    return %c0_i32, %c0_i32_0 : i32, i32
  }
  func.func @transform_4(%arg0: i32, %arg1: i32) -> (i32, i32, i32) {
    %c0_i32 = arith.constant 0 : i32
    %c0_i32_0 = arith.constant 0 : i32
    %c0_i32_1 = arith.constant 0 : i32
    return %arg0, %c0_i32, %c0_i32_0 : i32, i32, i32
  }
}

</mosaic_0001>

<llo_original>
// kernel: tpu_custom_call.1
$region0: #{tpu_custom_call.1}
  #allocation0 [shape = 'u32[]', space=smem, size = 0x4, offset = 0x4, fixed_abs, tag = 'smem constant byte address 0x4 - core index']
  #allocation1 [shape = 'u32[72,128]{1,0:T(1,128)}', space=vmem, size = 0x9000, scoped, tag = 'internal scratch']
  #allocation2 [shape = 'f32[4]{0:T(128)}', space=smem, size = 0x200, scoped, tag = 'scratch operand']
  %s0 = inlined_call_operand.hbm [shape: f32[16,512], index: 0, kind: input, shape index: {}]
  %s1 = inlined_call_operand.hbm [shape: f32[16,512], index: 1, kind: input, shape index: {}]
  %s2 = inlined_call_operand.hbm [shape: f32[1,512], index: 2, kind: input, shape index: {}]
  %s3 = inlined_call_operand.hbm [shape: f32[1,512], index: 3, kind: input, shape index: {}]
  %s4 = inlined_call_operand.hbm [shape: f32[2,8,128], index: 4, kind: output, shape index: {}]
  %s5 = sld [smem:[#allocation0]]
  $region77: #{tpu_custom_call.1} parent=0
    _
  %s7 = ssub.s32 1, %s5
  %s8 = scalar_select 0, %s7, %s5
  $region1: #{tpu_custom_call.1} parent=0
    #allocation3 [shape = 'u8[32768]{0}', space=vmem, size = 0x8000, scoped, tag = 'input window, operand 0']
    #allocation4 [shape = 's32[2]{0}', space=sflag, size = 0x8, scoped, tag = 'scoped memory for tpu_custom_call.1']
    #allocation5 [shape = 's32[2]{0}', space=sflag, size = 0x8, scoped, tag = 'scoped memory for tpu_custom_call.1']
    #allocation6 [shape = 'u8[32768]{0}', space=vmem, size = 0x8000, scoped, tag = 'input window, operand 1']
    #allocation7 [shape = 's32[2]{0}', space=sflag, size = 0x8, scoped, tag = 'scoped memory for tpu_custom_call.1']
    #allocation8 [shape = 'u8[2048]{0}', space=vmem, size = 0x800, scoped, tag = 'input window, operand 2, single buffered']
    #allocation9 [shape = 'u8[2048]{0}', space=vmem, size = 0x800, scoped, tag = 'input window, operand 3, single buffered']
    #allocation10 [shape = 's32[1]{0}', space=sflag, size = 0x4, scoped, tag = 'scoped memory for tpu_custom_call.1']
    #allocation11 [shape = 'u8[8192]{0}', space=vmem, size = 0x2000, scoped, tag = 'output window, operand 0']
    %9 = vsyncpa [#allocation4], 0
    %s10 = scalar_lea.sflag [#allocation4], 1
    %11 = vsyncpa %s10, 0
    %12 = vsyncpa [#allocation7], 0
    %s13 = scalar_lea.sflag [#allocation7], 1
    %14 = vsyncpa %s13, 0
    %15 = vsyncpa [#allocation10], 0
    %16 = vsyncpa [#allocation5], 0
    %s17 = scalar_lea.sflag [#allocation5], 1
    %18 = vsyncpa %s17, 0
    loop: start=0, step=1, limit=4
    $region2: #{tpu_custom_call.1} parent=1 // loop_pre_header
      _
    $region3: #{tpu_custom_call.1} parent=1 // loop_header
      %s20 = sphi 0, %s24
      %p21 = scmp.ge.s32.totalorder %s20, 4
      %s27 = sphi 0, %s39
      %s28 = sphi 0, %s35
      %s29 = sphi 0, %s27
      %s30 = sphi 0, %s28
      %s31 = sphi 0, %s29
      %s32 = sphi 0, %s30
      %s44 = sphi 0, %s46
      %s47 = sphi 0, %s44
      %s48 = sphi 0, %s47
      %s64 = sphi 0, %s48
      %s72 = sphi 0, %s74
      %s75 = sphi 0, %s72
      %s76 = sphi 0, %s75
      %s92 = sphi 0, %s76
      %s96 = sphi 0, %s96
      %s98 = sphi 0, %s96
      %s99 = sphi 0, %s98
      %s113 = sphi 0, %s99
      %s117 = sphi 0, %s117
      %s119 = sphi 0, %s117
      %s120 = sphi 0, %s119
      %s134 = sphi 0, %s120
      %s140 = sphi 0, %s142
      %s143 = sphi 0, %s140
      %s144 = sphi 0, %s143
      %s160 = sphi 0, %s144
    $region4: #{tpu_custom_call.1} parent=1 // loop_header_branch
      %23 = sbr.rel (%p21) target = $region8
    $region5: #{tpu_custom_call.1} parent=1 // loop_body
      %s25 = ssub.s32 %s20, 1
      %s26 = ssub.s32 %s20, 2
      %s33 = sadd.s32 1, %s28
      %p34 = scmp.ge.s32.totalorder %s33, 1
      %s35 = scalar_select %p34, 0, %s33
      %s36 = sadd.s32 1, %s27
      %s37 = scalar_select %p34, %s36, %s27
      %p38 = scmp.ge.s32.totalorder %s37, 2
      %s39 = scalar_select %p38, 0, %s37
      %s40 = sadd.s32 %s27, %s28
      %s41 = sadd.s32 %s39, %s35
      %s42 = ssub.s32 %s40, %s41
      %p43 = scmp.eq.s32.totalorder %s42, 0
      %s45 = sadd.s32 %s44, 1
      %s46 = scalar_select %p43, %s44, %s45
      %p49 = pneg %p43
      %p50 = scmp.eq.s32.totalorder %s20, 1
      %p51 = por %p49, %p50
      %p52 = scmp.ne.s32.totalorder %s44, %s47
      %p53 = scmp.eq.s32.totalorder %s20, 0
      %p54 = por %p52, %p53
      %p55 = scmp.ne.s32.totalorder %s44, %s47
      %p56 = scmp.eq.s32.totalorder %s25, 1
      %p57 = por %p55, %p56
      %p58 = scmp.ne.s32.totalorder %s47, %s48
      %p59 = scmp.eq.s32.totalorder %s25, 0
      %p60 = por %p58, %p59
      %p61 = scmp.ne.s32.totalorder %s47, %s48
      %p62 = scmp.eq.s32.totalorder %s26, 1
      %p63 = por %p61, %p62
      %p65 = scmp.ne.s32.totalorder %s48, %s64
      %p66 = scmp.eq.s32.totalorder %s26, 0
      %p67 = por %p65, %p66
      %s68 = sadd.s32 %s27, %s28
      %s69 = sadd.s32 %s39, %s35
      %s70 = ssub.s32 %s68, %s69
      %p71 = scmp.eq.s32.totalorder %s70, 0
      %s73 = sadd.s32 %s72, 1
      %s74 = scalar_select %p71, %s72, %s73
      %p77 = pneg %p71
      %p78 = scmp.eq.s32.totalorder %s20, 1
      %p79 = por %p77, %p78
      %p80 = scmp.ne.s32.totalorder %s72, %s75
      %p81 = scmp.eq.s32.totalorder %s20, 0
      %p82 = por %p80, %p81
      %p83 = scmp.ne.s32.totalorder %s72, %s75
      %p84 = scmp.eq.s32.totalorder %s25, 1
      %p85 = por %p83, %p84
      %p86 = scmp.ne.s32.totalorder %s75, %s76
      %p87 = scmp.eq.s32.totalorder %s25, 0
      %p88 = por %p86, %p87
      %p89 = scmp.ne.s32.totalorder %s75, %s76
      %p90 = scmp.eq.s32.totalorder %s26, 1
      %p91 = por %p89, %p90
      %p93 = scmp.ne.s32.totalorder %s76, %s92
      %p94 = scmp.eq.s32.totalorder %s26, 0
      %p95 = por %p93, %p94
      %s97 = sadd.s32 %s96, 1
      %p100 = scmp.eq.s32.totalorder %s20, 1
      %p101 = scmp.ne.s32.totalorder %s96, %s98
      %p102 = scmp.eq.s32.totalorder %s20, 0
      %p103 = por %p101, %p102
      %p104 = scmp.ne.s32.totalorder %s96, %s98
      %p105 = scmp.eq.s32.totalorder %s25, 1
      %p106 = por %p104, %p105
      %p107 = scmp.ne.s32.totalorder %s98, %s99
      %p108 = scmp.eq.s32.totalorder %s25, 0
      %p109 = por %p107, %p108
      %p110 = scmp.ne.s32.totalorder %s98, %s99
      %p111 = scmp.eq.s32.totalorder %s26, 1
      %p112 = por %p110, %p111
      %p114 = scmp.ne.s32.totalorder %s99, %s113
      %p115 = scmp.eq.s32.totalorder %s26, 0
      %p116 = por %p114, %p115
      %s118 = sadd.s32 %s117, 1
      %p121 = scmp.eq.s32.totalorder %s20, 1
      %p122 = scmp.ne.s32.totalorder %s117, %s119
      %p123 = scmp.eq.s32.totalorder %s20, 0
      %p124 = por %p122, %p123
      %p125 = scmp.ne.s32.totalorder %s117, %s119
      %p126 = scmp.eq.s32.totalorder %s25, 1
      %p127 = por %p125, %p126
      %p128 = scmp.ne.s32.totalorder %s119, %s120
      %p129 = scmp.eq.s32.totalorder %s25, 0
      %p130 = por %p128, %p129
      %p131 = scmp.ne.s32.totalorder %s119, %s120
      %p132 = scmp.eq.s32.totalorder %s26, 1
      %p133 = por %p131, %p132
      %p135 = scmp.ne.s32.totalorder %s120, %s134
      %p136 = scmp.eq.s32.totalorder %s26, 0
      %p137 = por %p135, %p136
      %s138 = ssub.s32 %s27, %s39
      %p139 = scmp.eq.s32.totalorder %s138, 0
      %s141 = sadd.s32 %s140, 1
      %s142 = scalar_select %p139, %s140, %s141
      %p145 = pneg %p139
      %p146 = scmp.eq.s32.totalorder %s20, 1
      %p147 = por %p145, %p146
      %p148 = scmp.ne.s32.totalorder %s140, %s143
      %p149 = scmp.eq.s32.totalorder %s20, 0
      %p150 = por %p148, %p149
      %p151 = scmp.ne.s32.totalorder %s140, %s143
      %p152 = scmp.eq.s32.totalorder %s25, 1
      %p153 = por %p151, %p152
      %p154 = scmp.ne.s32.totalorder %s143, %s144
      %p155 = scmp.eq.s32.totalorder %s25, 0
      %p156 = por %p154, %p155
      %p157 = scmp.ne.s32.totalorder %s143, %s144
      %p158 = scmp.eq.s32.totalorder %s26, 1
      %p159 = por %p157, %p158
      %p161 = scmp.ne.s32.totalorder %s144, %s160
      %p162 = scmp.eq.s32.totalorder %s26, 0
      %p163 = por %p161, %p162
      %p164 = scmp.le.s32.totalorder 1, %s20
      %p165 = scmp.lt.s32.totalorder %s20, 3
      %p166 = pnand %p164, %p165
      %p167 = pneg %p166
      // Predicated region
      $region9: #{tpu_custom_call.1} parent=5 // pred_check
        _
      $region10: #{tpu_custom_call.1} parent=5 // pred_check_branch
        %169 = sbr.rel (%p166) target = $region12
      $region11: #{tpu_custom_call.1} parent=5 // pred_region
        %s170 = ssub.s32 %s20, 1
        // Predicated region
        $region13: #{tpu_custom_call.1} parent=11 // pred_check
          %p171 = pneg %p109
        $region14: #{tpu_custom_call.1} parent=11 // pred_check_branch
          %173 = sbr.rel (%p171) target = $region16
        $region15: #{tpu_custom_call.1} parent=11 // pred_region
          %175 = vsyncadd [#allocation7], 0
          %s177 = sshll.u32 %s2, 4
          %s178 = int_to_ptr.hbm [resolvable:$true] %s177
          %s179 = sshll.u32 [#allocation8], 4
          %s180 = int_to_ptr.vmem [resolvable:$true] %s179
          %182 = dma.hbm_to_vmem [thread:$0]  %s178, 64, %s180, [#allocation7]
        $region16: #{tpu_custom_call.1} parent=11 // pred_fallthru
          _
        // Predicated region
        $region17: #{tpu_custom_call.1} parent=11 // pred_check
          %p183 = pneg %p130
        $region18: #{tpu_custom_call.1} parent=11 // pred_check_branch
          %185 = sbr.rel (%p183) target = $region20
        $region19: #{tpu_custom_call.1} parent=11 // pred_region
          %187 = vsyncadd [#allocation10], 0
          %s189 = sshll.u32 %s3, 4
          %s190 = int_to_ptr.hbm [resolvable:$true] %s189
          %s191 = sshll.u32 [#allocation9], 4
          %s192 = int_to_ptr.vmem [resolvable:$true] %s191
          %194 = dma.hbm_to_vmem [thread:$0]  %s190, 64, %s192, [#allocation10]
        $region20: #{tpu_custom_call.1} parent=11 // pred_fallthru
          _
      $region12: #{tpu_custom_call.1} parent=5 // pred_fallthru
        _
      %p195 = scmp.lt.s32.totalorder %s20, 2
      // Predicated region
      $region21: #{tpu_custom_call.1} parent=5 // pred_check
        %p196 = pneg %p195
      $region22: #{tpu_custom_call.1} parent=5 // pred_check_branch
        %198 = sbr.rel (%p196) target = $region24
      $region23: #{tpu_custom_call.1} parent=5 // pred_region
        // Predicated region
        $region25: #{tpu_custom_call.1} parent=23 // pred_check
          %p199 = pneg %p54
        $region26: #{tpu_custom_call.1} parent=23 // pred_check_branch
          %201 = sbr.rel (%p199) target = $region28
        $region27: #{tpu_custom_call.1} parent=23 // pred_region
          %s202 = sand.u32 %s44, 1
          %s203 = scalar_lea.sflag [#allocation4], %s202
          %s204 = sand.u32 %s44, 1
          %s205 = smul.addr %s204, 32
          %s206 = scalar_lea.vmem [#allocation3], %s205
          %s207 = sadd.s32 %s27, %s28
          %209 = vsyncadd %s203, 0
          %s210 = smul.addr %s207, 4
          %s211 = smul.addr %s210, 8
          %s212 = scalar_lea.hbm %s0, %s211
          %s214 = sshll.u32 %s212, 4
          %s215 = int_to_ptr.hbm [resolvable:$true] %s214
          %s216 = sshll.u32 %s206, 4
          %s217 = int_to_ptr.vmem [resolvable:$true] %s216
          %219 = dma.hbm_to_vmem [thread:$0]  %s215, 512, %s217, %s203
        $region28: #{tpu_custom_call.1} parent=23 // pred_fallthru
          _
        // Predicated region
        $region29: #{tpu_custom_call.1} parent=23 // pred_check
          %p220 = pneg %p82
        $region30: #{tpu_custom_call.1} parent=23 // pred_check_branch
          %222 = sbr.rel (%p220) target = $region32
        $region31: #{tpu_custom_call.1} parent=23 // pred_region
          %s223 = sand.u32 %s20, 1
          %s224 = scalar_lea.sflag [#allocation7], %s223
          %s225 = sand.u32 %s72, 1
          %s226 = smul.addr %s225, 32
          %s227 = scalar_lea.vmem [#allocation6], %s226
          %s228 = sadd.s32 %s27, %s28
          %230 = vsyncadd %s224, 0
          %s231 = smul.addr %s228, 4
          %s232 = smul.addr %s231, 8
          %s233 = scalar_lea.hbm %s1, %s232
          %s235 = sshll.u32 %s233, 4
          %s236 = int_to_ptr.hbm [resolvable:$true] %s235
          %s237 = sshll.u32 %s227, 4
          %s238 = int_to_ptr.vmem [resolvable:$true] %s237
          %240 = dma.hbm_to_vmem [thread:$0]  %s236, 512, %s238, %s224
        $region32: #{tpu_custom_call.1} parent=23 // pred_fallthru
          _
      $region24: #{tpu_custom_call.1} parent=5 // pred_fallthru
        _
      %p241 = scmp.le.s32.totalorder 1, %s20
      %p242 = scmp.lt.s32.totalorder %s20, 3
      %p243 = pnand %p241, %p242
      %p244 = pneg %p243
      // Predicated region
      $region33: #{tpu_custom_call.1} parent=5 // pred_check
        _
      $region34: #{tpu_custom_call.1} parent=5 // pred_check_branch
        %246 = sbr.rel (%p243) target = $region36
      $region35: #{tpu_custom_call.1} parent=5 // pred_region
        %s247 = ssub.s32 %s20, 1
        %s248 = sand.u32 %s47, 1
        %s249 = scalar_lea.sflag [#allocation4], %s248
        %s250 = sand.u32 %s47, 1
        %s251 = smul.addr %s250, 32
        %s252 = scalar_lea.vmem [#allocation3], %s251
        // Predicated region
        $region37: #{tpu_custom_call.1} parent=35 // pred_check
          %p253 = pneg %p60
        $region38: #{tpu_custom_call.1} parent=35 // pred_check_branch
          %255 = sbr.rel (%p253) target = $region40
        $region39: #{tpu_custom_call.1} parent=35 // pred_region
          %257 = dma.done %s249, 512
        $region40: #{tpu_custom_call.1} parent=35 // pred_fallthru
          _
        %s258 = sand.u32 %s25, 1
        %s259 = scalar_lea.sflag [#allocation7], %s258
        %s260 = sand.u32 %s75, 1
        %s261 = smul.addr %s260, 32
        %s262 = scalar_lea.vmem [#allocation6], %s261
        // Predicated region
        $region41: #{tpu_custom_call.1} parent=35 // pred_check
          %p263 = pneg %p88
        $region42: #{tpu_custom_call.1} parent=35 // pred_check_branch
          %265 = sbr.rel (%p263) target = $region44
        $region43: #{tpu_custom_call.1} parent=35 // pred_region
          %267 = dma.done %s259, 512
        $region44: #{tpu_custom_call.1} parent=35 // pred_fallthru
          _
        // Predicated region
        $region45: #{tpu_custom_call.1} parent=35 // pred_check
          %p268 = pneg %p109
        $region46: #{tpu_custom_call.1} parent=35 // pred_check_branch
          %270 = sbr.rel (%p268) target = $region48
        $region47: #{tpu_custom_call.1} parent=35 // pred_region
          %272 = dma.done [#allocation7], 64
        $region48: #{tpu_custom_call.1} parent=35 // pred_fallthru
          _
        // Predicated region
        $region49: #{tpu_custom_call.1} parent=35 // pred_check
          %p273 = pneg %p130
        $region50: #{tpu_custom_call.1} parent=35 // pred_check_branch
          %275 = sbr.rel (%p273) target = $region52
        $region51: #{tpu_custom_call.1} parent=35 // pred_region
          %277 = dma.done [#allocation10], 64
        $region52: #{tpu_custom_call.1} parent=35 // pred_fallthru
          _
        %s278 = sand.u32 %s47, 1
        %s279 = scalar_lea.sflag [#allocation4], %s278
        %s280 = sand.u32 %s47, 1
        %s281 = smul.addr %s280, 32
        %s282 = scalar_lea.vmem [#allocation3], %s281
        %p283 = pneg %p60
        %p284 = pneg %p57
        %s285 = sand.u32 %s25, 1
        %s286 = scalar_lea.sflag [#allocation7], %s285
        %s287 = sand.u32 %s75, 1
        %s288 = smul.addr %s287, 32
        %s289 = scalar_lea.vmem [#allocation6], %s288
        %p290 = pneg %p88
        %p291 = pneg %p85
        %p292 = pneg %p109
        %p293 = pneg %p106
        %p294 = pneg %p130
        %p295 = pneg %p127
        %p296 = pneg %p156
        %p297 = pneg %p153
        %s298 = sand.u32 %s143, 1
        %s299 = scalar_lea.sflag [#allocation5], %s298
        %s300 = sand.u32 %s143, 1
        %s301 = smul.addr %s300, 8
        %s302 = scalar_lea.vmem [#allocation11], %s301
        %s303 = sadd.s32 %s29, %s30
        %s304 = sadd.s32 %s29, %s30
        %p305 = scmp.eq.s32.totalorder %s30, 0
        // Predicated region
        $region53: #{tpu_custom_call.1} parent=35 // pred_check
          %p306 = pneg %p305
        $region54: #{tpu_custom_call.1} parent=35 // pred_check_branch
          %308 = sbr.rel (%p306) target = $region56
        $region55: #{tpu_custom_call.1} parent=35 // pred_region
          %s309 = scalar_lea.smem [#allocation2], 0
          %310 = sst [smem:[%s309]] 0.0
          %s311 = scalar_lea.smem [#allocation2], 1
          %312 = sst [smem:[%s311]] 0.0
          %s313 = scalar_lea.smem [#allocation2], 2
          %314 = sst [smem:[%s313]] 0.0
          %s315 = scalar_lea.smem [#allocation2], 3
          %316 = sst [smem:[%s315]] 0.0
        $region56: #{tpu_custom_call.1} parent=35 // pred_fallthru
          _
        %p317 = scmp.eq.s32.totalorder %s29, 0
        %p318 = pnand %p317, %p305
        %p319 = pneg %p318
        // Predicated region
        $region57: #{tpu_custom_call.1} parent=35 // pred_check
          _
        $region58: #{tpu_custom_call.1} parent=35 // pred_check_branch
          %321 = sbr.rel (%p318) target = $region60
        $region59: #{tpu_custom_call.1} parent=35 // pred_region
          %v322 = vld [vmem:[#allocation8] sm:$0xf]
          %v323 = vld [vmem:[#allocation9] sm:$0xf]
          %v324 = vand.u32 2147483647, %v322
          %v325 = vsub.f32 0.0, %v324
          %v326 = vmul.f32 %v325, 1.442695
          %v327 = vpow.pop %v326
          %v328 = vadd.f32 %v327, 1.0
          %v329 = vlog2.pop %v328
          %v330 = vmul.f32 %v329, 0.6931472
          %v331 = vmul.f32 -0.5, %v327
          %v332 = vadd.f32 %v331, 1.0
          %v333 = vmul.f32 %v332, %v327
          %v334 = vand.u32 2147483647, %v327
          %vm335 = vcmp.lt.f32.partialorder %v334, 0.0004427343
          %v336 = vsel %vm335, %v333, %v330
          %v337 = vmax.f32 %v322, 0.0
          %v338 = vsub.f32 0.0, %v322
          %v339 = vmax.f32 %v338, 0.0
          %v340 = vsub.f32 0.0, %v323
          %v341 = vmax.f32 %v340, 0.0
          %v342 = vand.u32 2147483647, %v323
          %v343 = vsub.f32 0.0, %v342
          %v344 = vmul.f32 %v343, 1.442695
          %v345 = vpow.pop %v344
          %v346 = vadd.f32 %v345, 1.0
          %v347 = vlog2.pop %v346
          %v348 = vmul.f32 %v347, 0.6931472
          %v349 = vmul.f32 -0.5, %v345
          %v350 = vadd.f32 %v349, 1.0
          %v351 = vmul.f32 %v350, %v345
          %v352 = vand.u32 2147483647, %v345
          %vm353 = vcmp.lt.f32.partialorder %v352, 0.0004427343
          %v354 = vsel %vm353, %v351, %v348
          %v355 = vadd.f32 %v341, %v354
          %v357 = vperm.slane %v336, 0
          %v358 = vperm.slane %v336, 1
          %v359 = vperm.slane %v336, 2
          %v360 = vperm.slane %v336, 3
          %vm365 = vcmask 1040384
          %v366 = vsel %vm365, %v357, 0.0
          %v367 = vsel %vm365, %v358, 0.0
          %v368 = vadd.f32 %v366, %v367
          %v369 = vsel %vm365, %v359, 0.0
          %v370 = vadd.f32 %v368, %v369
          %v371 = vsel %vm365, %v360, 0.0
          %v372 = vadd.f32 %v370, %v371
          %373 = vadd.xlane.f32.xlu0 %v372
          %v374 = vpop.xlane.xlu0 %373
          %v375 = vrot.slane %v374, 4
          %v376 = vadd.f32 %v374, %v375
          %v377 = vrot.slane %v376, 2
          %v378 = vadd.f32 %v376, %v377
          %v379 = vrot.slane %v378, 1
          %v380 = vadd.f32 %v378, %v379
          %s381 = vtos %v380
          %v383 = vperm.slane %v337, 0
          %v384 = vperm.slane %v337, 1
          %v385 = vperm.slane %v337, 2
          %v386 = vperm.slane %v337, 3
          %v391 = vsel %vm365, %v383, 0.0
          %v392 = vsel %vm365, %v384, 0.0
          %v393 = vadd.f32 %v391, %v392
          %v394 = vsel %vm365, %v385, 0.0
          %v395 = vadd.f32 %v393, %v394
          %v396 = vsel %vm365, %v386, 0.0
          %v397 = vadd.f32 %v395, %v396
          %398 = vadd.xlane.f32.xlu0 %v397
          %v399 = vpop.xlane.xlu0 %398
          %v400 = vrot.slane %v399, 4
          %v401 = vadd.f32 %v399, %v400
          %v402 = vrot.slane %v401, 2
          %v403 = vadd.f32 %v401, %v402
          %v404 = vrot.slane %v403, 1
          %v405 = vadd.f32 %v403, %v404
          %s406 = vtos %v405
          %s407 = sadd.f32 %s406, %s381
          %s408 = scalar_lea.smem [#allocation2], 1
          %409 = sst [smem:[%s408]] %s407
          %v411 = vperm.slane %v339, 0
          %v412 = vperm.slane %v339, 1
          %v413 = vperm.slane %v339, 2
          %v414 = vperm.slane %v339, 3
          %v419 = vsel %vm365, %v411, 0.0
          %v420 = vsel %vm365, %v412, 0.0
          %v421 = vadd.f32 %v419, %v420
          %v422 = vsel %vm365, %v413, 0.0
          %v423 = vadd.f32 %v421, %v422
          %v424 = vsel %vm365, %v414, 0.0
          %v425 = vadd.f32 %v423, %v424
          %426 = vadd.xlane.f32.xlu0 %v425
          %v427 = vpop.xlane.xlu0 %426
          %v428 = vrot.slane %v427, 4
          %v429 = vadd.f32 %v427, %v428
          %v430 = vrot.slane %v429, 2
          %v431 = vadd.f32 %v429, %v430
          %v432 = vrot.slane %v431, 1
          %v433 = vadd.f32 %v431, %v432
          %s434 = vtos %v433
          %s435 = sadd.f32 %s434, %s381
          %s436 = scalar_lea.smem [#allocation2], 2
          %437 = sst [smem:[%s436]] %s435
          %v439 = vperm.slane %v355, 0
          %v440 = vperm.slane %v355, 1
          %v441 = vperm.slane %v355, 2
          %v442 = vperm.slane %v355, 3
          %v447 = vsel %vm365, %v439, 0.0
          %v448 = vsel %vm365, %v440, 0.0
          %v449 = vadd.f32 %v447, %v448
          %v450 = vsel %vm365, %v441, 0.0
          %v451 = vadd.f32 %v449, %v450
          %v452 = vsel %vm365, %v442, 0.0
          %v453 = vadd.f32 %v451, %v452
          %454 = vadd.xlane.f32.xlu0 %v453
          %v455 = vpop.xlane.xlu0 %454
          %v456 = vrot.slane %v455, 4
          %v457 = vadd.f32 %v455, %v456
          %v458 = vrot.slane %v457, 2
          %v459 = vadd.f32 %v457, %v458
          %v460 = vrot.slane %v459, 1
          %v461 = vadd.f32 %v459, %v460
          %s462 = vtos %v461
          %s463 = scalar_lea.smem [#allocation2], 3
          %464 = sst [smem:[%s463]] %s462
        $region60: #{tpu_custom_call.1} parent=35 // pred_fallthru
          _
        %v465 = vld [vmem:[%s252] sm:$0xff]
        %v466 = vld [vmem:[%s252 + $0x8] sm:$0xff]
        %v467 = vld [vmem:[%s252 + $0x10] sm:$0xff]
        %v468 = vld [vmem:[%s252 + $0x18] sm:$0xff]
        %v469 = vld [vmem:[%s262] sm:$0xff]
        %v470 = vld [vmem:[%s262 + $0x8] sm:$0xff]
        %v471 = vld [vmem:[%s262 + $0x10] sm:$0xff]
        %v472 = vld [vmem:[%s262 + $0x18] sm:$0xff]
        %s473 = sld [smem:[#allocation2]]
        %v474 = vsub.f32 %v465, %v469
        %v475 = vsub.f32 %v466, %v470
        %v476 = vsub.f32 %v467, %v471
        %v477 = vsub.f32 %v468, %v472
        %v478 = vand.u32 2147483647, %v474
        %v479 = vand.u32 2147483647, %v475
        %v480 = vand.u32 2147483647, %v476
        %v481 = vand.u32 2147483647, %v477
        %v482 = vadd.f32 %v478, %v479
        %v483 = vadd.f32 %v482, %v480
        %v484 = vadd.f32 %v483, %v481
        %485 = vadd.xlane.f32.xlu0 %v484
        %v486 = vpop.xlane.xlu0 %485
        %v487 = vrot.slane %v486, 4
        %v488 = vadd.f32 %v486, %v487
        %v489 = vrot.slane %v488, 2
        %v490 = vadd.f32 %v488, %v489
        %v491 = vrot.slane %v490, 1
        %v492 = vadd.f32 %v490, %v491
        %s493 = vtos %v492
        %s494 = sadd.f32 %s473, %s493
        %s495 = scalar_lea.smem [#allocation2], 0
        %496 = sst [smem:[%s495]] %s494
        // Predicated region
        $region61: #{tpu_custom_call.1} parent=35 // pred_check
          %p497 = pneg %p305
        $region62: #{tpu_custom_call.1} parent=35 // pred_check_branch
          %499 = sbr.rel (%p497) target = $region64
        $region63: #{tpu_custom_call.1} parent=35 // pred_region
          %v500 = vlaneseq
          %v501 = vshrl.u32 %v500, 7
          %vm502 = vcmp.eq.s32.totalorder %v501, 0
          %s503 = sld [smem:[#allocation2]]
          %v504 = vstv %s503
          %v505 = vsel %vm502, %v504, 0.0
          %vm506 = vcmp.eq.s32.totalorder %v501, 1
          %s507 = sld [smem:[#allocation2 + $0x1]]
          %v508 = vstv %s507
          %v509 = vsel %vm506, %v508, %v505
          %vm510 = vcmp.eq.s32.totalorder %v501, 2
          %s511 = sld [smem:[#allocation2 + $0x2]]
          %v512 = vstv %s511
          %v513 = vsel %vm510, %v512, %v509
          %vm514 = vcmp.eq.s32.totalorder %v501, 3
          %s515 = sld [smem:[#allocation2 + $0x3]]
          %v516 = vstv %s515
          %v517 = vsel %vm514, %v516, %v513
          %518 = vst [vmem:[%s302] sm:$0xff] %v517
        $region64: #{tpu_custom_call.1} parent=35 // pred_fallthru
          _
        %s519 = sand.u32 %s143, 1
        %s520 = scalar_lea.sflag [#allocation5], %s519
        %s521 = sand.u32 %s143, 1
        %s522 = smul.addr %s521, 8
        %s523 = scalar_lea.vmem [#allocation11], %s522
        // Predicated region
        $region65: #{tpu_custom_call.1} parent=35 // pred_check
          %p524 = pneg %p153
        $region66: #{tpu_custom_call.1} parent=35 // pred_check_branch
          %526 = sbr.rel (%p524) target = $region68
        $region67: #{tpu_custom_call.1} parent=35 // pred_region
          %528 = vsyncadd %s520, 0
          %s529 = smul.addr %s29, 8
          %s530 = scalar_lea.hbm %s4, %s529
          %s532 = sshll.u32 %s523, 4
          %s533 = int_to_ptr.vmem [resolvable:$true] %s532
          %s534 = sshll.u32 %s530, 4
          %s535 = int_to_ptr.hbm [resolvable:$true] %s534
          %537 = dma.vmem_to_hbm [thread:$0]  %s533, 128, %s535, %s520
        $region68: #{tpu_custom_call.1} parent=35 // pred_fallthru
          _
      $region36: #{tpu_custom_call.1} parent=5 // pred_fallthru
        _
      %p538 = scmp.le.s32.totalorder 2, %s20
      // Predicated region
      $region69: #{tpu_custom_call.1} parent=5 // pred_check
        %p539 = pneg %p538
      $region70: #{tpu_custom_call.1} parent=5 // pred_check_branch
        %541 = sbr.rel (%p539) target = $region72
      $region71: #{tpu_custom_call.1} parent=5 // pred_region
        %s542 = ssub.s32 %s20, 2
        // Predicated region
        $region73: #{tpu_custom_call.1} parent=71 // pred_check
          %p543 = pneg %p159
        $region74: #{tpu_custom_call.1} parent=71 // pred_check_branch
          %545 = sbr.rel (%p543) target = $region76
        $region75: #{tpu_custom_call.1} parent=71 // pred_region
          %s546 = sand.u32 %s144, 1
          %s547 = scalar_lea.sflag [#allocation5], %s546
          %s548 = sand.u32 %s144, 1
          %s549 = smul.addr %s548, 8
          %s550 = scalar_lea.vmem [#allocation11], %s549
          %552 = dma.done %s547, 128
        $region76: #{tpu_custom_call.1} parent=71 // pred_fallthru
          _
      $region72: #{tpu_custom_call.1} parent=5 // pred_fallthru
        _
    $region6: #{tpu_custom_call.1} parent=1 // loop_footer
      %s24 = sadd.s32 1, %s20
    $region7: #{tpu_custom_call.1} parent=1 // loop_footer_branch
      %19 = sbr.rel target = $region3
    $region8: #{tpu_custom_call.1} parent=1 // loop_exit
      _
    %553 = vsyncpa [#allocation4], 1
    %s554 = scalar_lea.sflag [#allocation4], 1
    %555 = vsyncpa %s554, 1
    %556 = vsyncpa [#allocation7], 1
    %s557 = scalar_lea.sflag [#allocation7], 1
    %558 = vsyncpa %s557, 1
    %559 = vsyncpa [#allocation10], 1
    %560 = vsyncpa [#allocation5], 1
    %s561 = scalar_lea.sflag [#allocation5], 1
    %562 = vsyncpa %s561, 1

</llo_original>
